<compile_context>
chip_gen: v7x
topology: tpu7x:2x2x1
jax: 0.10.0
libtpu: 0.0.40
codegen_flags: <defaults>
</compile_context>

<pallas_src>
import jax
import jax.numpy as jnp
from jax.experimental import pallas as pl
from jax.experimental.pallas import tpu as pltpu

BN_EPS = 1e-5

# v7x has 64 MiB physical VMEM per TensorCore (half of v5e/v6e); keep the fully
# resident design comfortably under its scoped budget so the same kernel is safe
# on every generation.
_V7X_SAFE_VMEM_BYTES = 28 << 20


def _make_encoder_kernel(num_layers, batch, n_per_batch):
    """Kernel for an MLP of `num_layers` Conv1d(k=1) layers in (C, M) layout.

    Parameter refs per hidden layer : w (Cout, Cin) bf16, gamma (Cout, 1) f32, beta (Cout, 1) f32
    Last layer                      : w (Cout, Cin) bf16 only
    (hidden conv biases cancel against training-mode BN mean subtraction;
     the final conv bias is zero-initialized by the module.)
    """
    m_total = batch * n_per_batch
    inv_m = 1.0 / float(m_total)

    def kernel(x_ref, *refs):
        out_ref = refs[-1]
        p = refs[:-1]
        # Input arrives as f32; cast to bf16 here, in VMEM (no wrapper-side astype).
        h = x_ref[...].astype(jnp.bfloat16)                   # (C0, M)
        idx = 0
        for li in range(num_layers):
            is_last = li == num_layers - 1
            w = p[idx][...]                                   # (Cout, Cin) bf16
            idx += 1
            # Conv1d(kernel_size=1) == per-position channel mix: (Cout,Cin)@(Cin,M) on the MXU.
            h = jnp.dot(w, h, preferred_element_type=jnp.float32)      # (Cout, M) f32
            if not is_last:
                g = p[idx][...]                               # (Cout, 1) BN weight
                be = p[idx + 1][...]                          # (Cout, 1) BN bias
                idx += 2
                # Single-pass biased stats over the M positions (lane reduce -> XLU).
                mean = jnp.sum(h, axis=1, keepdims=True) * inv_m        # (Cout, 1)
                meansq = jnp.sum(h * h, axis=1, keepdims=True) * inv_m  # (Cout, 1)
                var = jnp.maximum(meansq - mean * mean, 0.0)
                # Fold BN affine into one per-channel scale/shift, fused with ReLU (all f32).
                scale = g * jax.lax.rsqrt(var + BN_EPS)                 # (Cout, 1)
                shift = be - mean * scale
                h = jnp.maximum(h * scale + shift, 0.0)
                h = h.astype(jnp.bfloat16)                    # operand for the next MXU matmul
            # final layer: conv bias is zero-initialized by the module -> no add needed.

        # Fused output transpose: (D, M=B*N) -> (B, D, N) via static, lane-aligned
        # per-batch stores (N is a multiple of 128 here -> unmasked, lane-dense vst).
        for b in range(batch):
            out_ref[b] = h[:, b * n_per_batch:(b + 1) * n_per_batch].astype(out_ref.dtype)

    return kernel


def _pack_kernel_params(params):
    """Structured per-layer params -> flat kernel operands in (C, M)-layout shapes."""
    flat = []
    n = len(params)
    for li, p in enumerate(params):
        flat.append(p["w"].astype(jnp.bfloat16))                      # (Cout, Cin)
        if li < n - 1:
            g, be = p["bn"]
            flat.append(g.reshape(-1, 1).astype(jnp.float32))         # BN gamma (Cout, 1)
            flat.append(be.reshape(-1, 1).astype(jnp.float32))        # BN beta  (Cout, 1)
            # hidden conv bias dropped: cancels against BN mean subtraction
        # last layer: bias is zero-initialized by the module -> not passed at all
    return flat


def descriptor_encoder_forward(kpts, params, channels):
    """kpts: (feature_dim, B, N) float32.  Returns (B, feature_dim, N), as the module does."""
    D, B, N = kpts.shape
    assert D == channels[0] == channels[-1]
    M = B * N

    # Channels-leading already: (D, B, N) -> (D, M) is a free reshape (no HBM transpose).
    # Keep f32 here; the bf16 cast happens inside the kernel.
    x = kpts.reshape(D, M)

    flat = _pack_kernel_params(params)
    num_layers = len(channels) - 1
    kernel = _make_encoder_kernel(num_layers, B, N)

    # Cost estimate for XLA's scheduler around the custom call.
    param_bytes = sum(int(p.size) * p.dtype.itemsize for p in flat)
    in_bytes = D * M * 4
    out_bytes = B * D * N * 4
    flops = int(2 * M * sum(channels[i] * channels[i + 1] for i in range(num_layers)))
    transcendentals = int(sum(channels[i + 1] for i in range(num_layers - 1)))  # rsqrt / channel
    cost = pl.CostEstimate(flops=flops, transcendentals=transcendentals,
                           bytes_accessed=int(in_bytes + out_bytes + param_bytes))

    # Working set: in/out blocks (single-buffered, grid-less call) + params + a few
    # live f32 activations.  Gate the fully resident design on a v7x-safe budget.
    act_bytes = max(channels) * M * 4
    needed = 3 * act_bytes + in_bytes + out_bytes + param_bytes
    if needed > _V7X_SAFE_VMEM_BYTES:
        # TODO(synk): M-tiled two-pass-BN grid variant (with masked partial tiles so
        # the BN statistics stay unbiased) for working sets above the v7x VMEM gate.
        raise NotImplementedError(
            f"DescriptorEncoder working set {needed} B exceeds the v7x-safe VMEM budget "
            f"{_V7X_SAFE_VMEM_BYTES} B; the M-tiled two-pass-BN variant is not implemented.")
    # ~2x the actual need plus small fixed headroom (no 32 MiB floor).
    vmem_bytes = int(2 * needed + (2 << 20))

    vmem_spec = pl.BlockSpec(memory_space=pltpu.MemorySpace.VMEM)
    out = pl.pallas_call(
        kernel,
        out_shape=jax.ShapeDtypeStruct((B, D, N), jnp.float32),
        in_specs=[vmem_spec] * (1 + len(flat)),
        out_specs=vmem_spec,
        compiler_params=pltpu.CompilerParams(vmem_limit_bytes=vmem_bytes),
        cost_estimate=cost,
    )(x, *flat)

    # Output transpose is fused into the kernel; nothing else to do.
    return out


def init_params(key, feature_dim, layer_sizes):
    """Deterministic synthetic parameters with the same shapes/roles as the PyTorch module."""
    channels = [feature_dim] + list(layer_sizes) + [feature_dim]
    params = []
    for i in range(1, len(channels)):
        cin, cout = channels[i - 1], channels[i]
        key, kw, kb, kg, kbe = jax.random.split(key, 5)
        # Conv1d weight (cout, cin, 1) -> stored (cout, cin)
        w = jax.random.normal(kw, (cout, cin), jnp.float32) * (1.0 / jnp.sqrt(jnp.float32(cin)))
        is_last = i == len(channels) - 1
        if is_last:
            b = jnp.zeros((cout,), jnp.float32)   # nn.init.constant_(encoder[-1].bias, 0.0)
            params.append({"w": w, "b": b, "bn": None})
        else:
            b = 0.1 * jax.random.normal(kb, (cout,), jnp.float32)
            gamma = 1.0 + 0.1 * jax.random.normal(kg, (cout,), jnp.float32)
            beta = 0.1 * jax.random.normal(kbe, (cout,), jnp.float32)
            params.append({"w": w, "b": b, "bn": (gamma, beta)})
    return params, channels


def _reference_forward(kpts, params):
    """Pure-JAX, f32, PyTorch-faithful reference (two-pass BN stats, all conv biases)."""
    D, B, N = kpts.shape
    x = jnp.transpose(kpts, (1, 2, 0)).reshape(B * N, D)          # (M, C) channels-last
    h = x
    n = len(params)
    for li, p in enumerate(params):
        h = h @ p["w"].T + p["b"]
        if li < n - 1:
            g, be = p["bn"]
            mean = jnp.mean(h, axis=0, keepdims=True)
            var = jnp.mean((h - mean) ** 2, axis=0, keepdims=True)  # biased, training-mode BN
            h = (h - mean) * jax.lax.rsqrt(var + BN_EPS) * g + be
            h = jnp.maximum(h, 0.0)
    return jnp.transpose(h.reshape(B, N, D), (0, 2, 1))            # (B, D, N)


if __name__ == "__main__":
    feature_dim = 32
    hidden_layers = [64, 64]          # DescriptorEncoder(feature_dim=32, layers=[64, 64])
    B, N = 2, 128                     # batch, number of keypoints -> M = 256 positions

    key = jax.random.PRNGKey(0)
    key, kx = jax.random.split(key)
    # kpts as fed to the PyTorch module: shape (feature_dim, B, N)
    kpts = jax.random.normal(kx, (feature_dim, B, N), jnp.float32)

    params, channels = init_params(key, feature_dim, hidden_layers)

    out = descriptor_encoder_forward(kpts, params, channels)
    out = jax.block_until_ready(out)

    ref = _reference_forward(kpts, params)
    assert out.shape == (B, feature_dim, N)
    # bf16 matmul operands (f32 accumulation) vs full-f32 reference: allow ~5% relative error.
    err = float(jnp.max(jnp.abs(out - ref)))
    scale = float(jnp.max(jnp.abs(ref))) + 1e-6
    assert err <= 5e-2 * scale, (err, scale)

    print("KERNEL_OK")
</pallas_src>

<mosaic_0001>
module attributes {stable_mosaic.version = 11 : i64} {
  func.func @kernel(%arg0: memref<32x256xf32, #tpu.memory_space<vmem>>, %arg1: memref<64x32xbf16, #tpu.memory_space<vmem>>, %arg2: memref<64x1xf32, #tpu.memory_space<vmem>>, %arg3: memref<64x1xf32, #tpu.memory_space<vmem>>, %arg4: memref<64x64xbf16, #tpu.memory_space<vmem>>, %arg5: memref<64x1xf32, #tpu.memory_space<vmem>>, %arg6: memref<64x1xf32, #tpu.memory_space<vmem>>, %arg7: memref<32x64xbf16, #tpu.memory_space<vmem>>, %arg8: memref<2x32x128xf32, #tpu.memory_space<vmem>>) attributes {dimension_semantics = [], scalar_prefetch = 0 : i64, scratch_operands = 0 : i64, tpu.core_type = #tpu.core_type<tc>} {
    %c0 = arith.constant 0 : index
    %c0_0 = arith.constant 0 : index
    %0 = vector.load %arg0[%c0, %c0_0] : memref<32x256xf32, #tpu.memory_space<vmem>>, vector<32x256xf32>
    %1 = arith.truncf %0 : vector<32x256xf32> to vector<32x256xbf16>
    %c0_1 = arith.constant 0 : index
    %c0_2 = arith.constant 0 : index
    %2 = vector.load %arg1[%c0_1, %c0_2] : memref<64x32xbf16, #tpu.memory_space<vmem>>, vector<64x32xbf16>
    %cst = arith.constant dense<0.000000e+00> : vector<64x256xf32>
    %3 = tpu.matmul %2, %1, %cst {dimension_numbers = #tpu.dot_dimension_numbers<[1], [0], [0], [1], [0, 0, 1, 1], [], []>} : vector<64x32xbf16>, vector<32x256xbf16>, vector<64x256xf32> -> vector<64x256xf32>
    %c0_3 = arith.constant 0 : index
    %c0_4 = arith.constant 0 : index
    %4 = vector.load %arg2[%c0_3, %c0_4] : memref<64x1xf32, #tpu.memory_space<vmem>>, vector<64x1xf32>
    %c0_5 = arith.constant 0 : index
    %c0_6 = arith.constant 0 : index
    %5 = vector.load %arg3[%c0_5, %c0_6] : memref<64x1xf32, #tpu.memory_space<vmem>>, vector<64x1xf32>
    %cst_7 = arith.constant dense<0.000000e+00> : vector<64xf32>
    %6 = vector.multi_reduction <add>, %3, %cst_7 [1] : vector<64x256xf32> to vector<64xf32>
    %7 = vector.shape_cast %6 : vector<64xf32> to vector<64x1xf32>
    %cst_8 = arith.constant 3.906250e-03 : f32
    %8 = vector.broadcast %cst_8 : f32 to vector<64x1xf32>
    %9 = arith.mulf %7, %8 : vector<64x1xf32>
    %10 = arith.mulf %3, %3 : vector<64x256xf32>
    %cst_9 = arith.constant dense<0.000000e+00> : vector<64xf32>
    %11 = vector.multi_reduction <add>, %10, %cst_9 [1] : vector<64x256xf32> to vector<64xf32>
    %12 = vector.shape_cast %11 : vector<64xf32> to vector<64x1xf32>
    %cst_10 = arith.constant 3.906250e-03 : f32
    %13 = vector.broadcast %cst_10 : f32 to vector<64x1xf32>
    %14 = arith.mulf %12, %13 : vector<64x1xf32>
    %15 = arith.mulf %9, %9 : vector<64x1xf32>
    %16 = arith.subf %14, %15 : vector<64x1xf32>
    %cst_11 = arith.constant 0.000000e+00 : f32
    %17 = vector.broadcast %cst_11 : f32 to vector<64x1xf32>
    %18 = arith.maximumf %16, %17 : vector<64x1xf32>
    %cst_12 = arith.constant 9.99999974E-6 : f32
    %19 = vector.broadcast %cst_12 : f32 to vector<64x1xf32>
    %20 = arith.addf %18, %19 : vector<64x1xf32>
    %21 = math.rsqrt %20 : vector<64x1xf32>
    %22 = arith.mulf %4, %21 : vector<64x1xf32>
    %23 = arith.mulf %9, %22 : vector<64x1xf32>
    %24 = arith.subf %5, %23 : vector<64x1xf32>
    %25 = vector.broadcast %22 : vector<64x1xf32> to vector<64x256xf32>
    %26 = arith.mulf %3, %25 : vector<64x256xf32>
    %27 = vector.broadcast %24 : vector<64x1xf32> to vector<64x256xf32>
    %28 = arith.addf %26, %27 : vector<64x256xf32>
    %cst_13 = arith.constant 0.000000e+00 : f32
    %29 = vector.broadcast %cst_13 : f32 to vector<64x256xf32>
    %30 = arith.maximumf %28, %29 : vector<64x256xf32>
    %31 = arith.truncf %30 : vector<64x256xf32> to vector<64x256xbf16>
    %c0_14 = arith.constant 0 : index
    %c0_15 = arith.constant 0 : index
    %32 = vector.load %arg4[%c0_14, %c0_15] : memref<64x64xbf16, #tpu.memory_space<vmem>>, vector<64x64xbf16>
    %cst_16 = arith.constant dense<0.000000e+00> : vector<64x256xf32>
    %33 = tpu.matmul %32, %31, %cst_16 {dimension_numbers = #tpu.dot_dimension_numbers<[1], [0], [0], [1], [0, 0, 1, 1], [], []>} : vector<64x64xbf16>, vector<64x256xbf16>, vector<64x256xf32> -> vector<64x256xf32>
    %c0_17 = arith.constant 0 : index
    %c0_18 = arith.constant 0 : index
    %34 = vector.load %arg5[%c0_17, %c0_18] : memref<64x1xf32, #tpu.memory_space<vmem>>, vector<64x1xf32>
    %c0_19 = arith.constant 0 : index
    %c0_20 = arith.constant 0 : index
    %35 = vector.load %arg6[%c0_19, %c0_20] : memref<64x1xf32, #tpu.memory_space<vmem>>, vector<64x1xf32>
    %cst_21 = arith.constant dense<0.000000e+00> : vector<64xf32>
    %36 = vector.multi_reduction <add>, %33, %cst_21 [1] : vector<64x256xf32> to vector<64xf32>
    %37 = vector.shape_cast %36 : vector<64xf32> to vector<64x1xf32>
    %cst_22 = arith.constant 3.906250e-03 : f32
    %38 = vector.broadcast %cst_22 : f32 to vector<64x1xf32>
    %39 = arith.mulf %37, %38 : vector<64x1xf32>
    %40 = arith.mulf %33, %33 : vector<64x256xf32>
    %cst_23 = arith.constant dense<0.000000e+00> : vector<64xf32>
    %41 = vector.multi_reduction <add>, %40, %cst_23 [1] : vector<64x256xf32> to vector<64xf32>
    %42 = vector.shape_cast %41 : vector<64xf32> to vector<64x1xf32>
    %cst_24 = arith.constant 3.906250e-03 : f32
    %43 = vector.broadcast %cst_24 : f32 to vector<64x1xf32>
    %44 = arith.mulf %42, %43 : vector<64x1xf32>
    %45 = arith.mulf %39, %39 : vector<64x1xf32>
    %46 = arith.subf %44, %45 : vector<64x1xf32>
    %cst_25 = arith.constant 0.000000e+00 : f32
    %47 = vector.broadcast %cst_25 : f32 to vector<64x1xf32>
    %48 = arith.maximumf %46, %47 : vector<64x1xf32>
    %cst_26 = arith.constant 9.99999974E-6 : f32
    %49 = vector.broadcast %cst_26 : f32 to vector<64x1xf32>
    %50 = arith.addf %48, %49 : vector<64x1xf32>
    %51 = math.rsqrt %50 : vector<64x1xf32>
    %52 = arith.mulf %34, %51 : vector<64x1xf32>
    %53 = arith.mulf %39, %52 : vector<64x1xf32>
    %54 = arith.subf %35, %53 : vector<64x1xf32>
    %55 = vector.broadcast %52 : vector<64x1xf32> to vector<64x256xf32>
    %56 = arith.mulf %33, %55 : vector<64x256xf32>
    %57 = vector.broadcast %54 : vector<64x1xf32> to vector<64x256xf32>
    %58 = arith.addf %56, %57 : vector<64x256xf32>
    %cst_27 = arith.constant 0.000000e+00 : f32
    %59 = vector.broadcast %cst_27 : f32 to vector<64x256xf32>
    %60 = arith.maximumf %58, %59 : vector<64x256xf32>
    %61 = arith.truncf %60 : vector<64x256xf32> to vector<64x256xbf16>
    %c0_28 = arith.constant 0 : index
    %c0_29 = arith.constant 0 : index
    %62 = vector.load %arg7[%c0_28, %c0_29] : memref<32x64xbf16, #tpu.memory_space<vmem>>, vector<32x64xbf16>
    %cst_30 = arith.constant dense<0.000000e+00> : vector<32x256xf32>
    %63 = tpu.matmul %62, %61, %cst_30 {dimension_numbers = #tpu.dot_dimension_numbers<[1], [0], [0], [1], [0, 0, 1, 1], [], []>} : vector<32x64xbf16>, vector<64x256xbf16>, vector<32x256xf32> -> vector<32x256xf32>
    %64 = vector.extract_strided_slice %63 {offsets = [0, 0], sizes = [32, 128], strides = [1, 1]} : vector<32x256xf32> to vector<32x128xf32>
    %c0_31 = arith.constant 0 : index
    %c0_32 = arith.constant 0 : index
    %c0_33 = arith.constant 0 : index
    %65 = vector.load %arg8[%c0_31, %c0_32, %c0_33] : memref<2x32x128xf32, #tpu.memory_space<vmem>>, vector<1x32x128xf32>
    %66 = vector.shape_cast %65 : vector<1x32x128xf32> to vector<32x128xf32>
    %67 = vector.shape_cast %64 : vector<32x128xf32> to vector<1x32x128xf32>
    tpu.vector_store %arg8[%c0_31, %c0_32, %c0_33], %67 {strides = array<i32>} : memref<2x32x128xf32, #tpu.memory_space<vmem>>, vector<1x32x128xf32>,
    %68 = vector.extract_strided_slice %63 {offsets = [0, 128], sizes = [32, 128], strides = [1, 1]} : vector<32x256xf32> to vector<32x128xf32>
    %c1 = arith.constant 1 : index
    %c0_34 = arith.constant 0 : index
    %c0_35 = arith.constant 0 : index
    %69 = vector.load %arg8[%c1, %c0_34, %c0_35] : memref<2x32x128xf32, #tpu.memory_space<vmem>>, vector<1x32x128xf32>
    %70 = vector.shape_cast %69 : vector<1x32x128xf32> to vector<32x128xf32>
    %71 = vector.shape_cast %68 : vector<32x128xf32> to vector<1x32x128xf32>
    tpu.vector_store %arg8[%c1, %c0_34, %c0_35], %71 {strides = array<i32>} : memref<2x32x128xf32, #tpu.memory_space<vmem>>, vector<1x32x128xf32>,
    return
  }
}

</mosaic_0001>

<llo_original>
// kernel: tpu_custom_call.1
$region0: #{tpu_custom_call.1}
  #allocation0 [shape = 'u32[]', space=smem, size = 0x4, offset = 0x4, fixed_abs, tag = 'smem constant byte address 0x4 - core index']
  #allocation1 [shape = 'u32[144,128]{1,0:T(1,128)}', space=vmem, size = 0x12000, scoped, tag = 'internal scratch']
  %s0 = inlined_call_operand.vmem [shape: f32[32,256], index: 0, kind: input, shape index: {}]
  %s1 = inlined_call_operand.vmem [shape: bf16[64,32], index: 1, kind: input, shape index: {}]
  %s2 = inlined_call_operand.vmem [shape: f32[64,1], index: 2, kind: input, shape index: {}]
  %s3 = inlined_call_operand.vmem [shape: f32[64,1], index: 3, kind: input, shape index: {}]
  %s4 = inlined_call_operand.vmem [shape: bf16[64,64], index: 4, kind: input, shape index: {}]
  %s5 = inlined_call_operand.vmem [shape: f32[64,1], index: 5, kind: input, shape index: {}]
  %s6 = inlined_call_operand.vmem [shape: f32[64,1], index: 6, kind: input, shape index: {}]
  %s7 = inlined_call_operand.vmem [shape: bf16[32,64], index: 7, kind: input, shape index: {}]
  %s8 = inlined_call_operand.hbm [shape: f32[2,32,128], index: 8, kind: output, shape index: {}]
  %s9 = sld [smem:[#allocation0]]
  $region42: #{tpu_custom_call.1} parent=0
    _
  %s11 = ssub.s32 1, %s9
  %s12 = scalar_select 0, %s11, %s9
  $region1: #{tpu_custom_call.1} parent=0
    #allocation2 [shape = 'u8[32768]{0}', space=vmem, size = 0x8000, scoped, tag = 'output window, operand 0, single buffered']
    #allocation3 [shape = 's32[1]{0}', space=sflag, size = 0x4, scoped, tag = 'scoped memory for tpu_custom_call.1']
    %13 = vsyncpa [#allocation3], 0
    // Predicated region
    $region2: #{tpu_custom_call.1} parent=1 // pred_check
      _
    $region3: #{tpu_custom_call.1} parent=1 // pred_check_branch
      %15 = sbr.rel (0) target = $region5
    $region4: #{tpu_custom_call.1} parent=1 // pred_region
      _
    $region5: #{tpu_custom_call.1} parent=1 // pred_fallthru
      _
    // Predicated region
    $region6: #{tpu_custom_call.1} parent=1 // pred_check
      _
    $region7: #{tpu_custom_call.1} parent=1 // pred_check_branch
      %17 = sbr.rel (0) target = $region9
    $region8: #{tpu_custom_call.1} parent=1 // pred_region
      _
    $region9: #{tpu_custom_call.1} parent=1 // pred_fallthru
      _
    // Predicated region
    $region10: #{tpu_custom_call.1} parent=1 // pred_check
      _
    $region11: #{tpu_custom_call.1} parent=1 // pred_check_branch
      %19 = sbr.rel (0) target = $region13
    $region12: #{tpu_custom_call.1} parent=1 // pred_region
      _
    $region13: #{tpu_custom_call.1} parent=1 // pred_fallthru
      _
    // Predicated region
    $region14: #{tpu_custom_call.1} parent=1 // pred_check
      _
    $region15: #{tpu_custom_call.1} parent=1 // pred_check_branch
      %21 = sbr.rel (0) target = $region17
    $region16: #{tpu_custom_call.1} parent=1 // pred_region
      _
    $region17: #{tpu_custom_call.1} parent=1 // pred_fallthru
      _
    // Predicated region
    $region18: #{tpu_custom_call.1} parent=1 // pred_check
      _
    $region19: #{tpu_custom_call.1} parent=1 // pred_check_branch
      %23 = sbr.rel (0) target = $region21
    $region20: #{tpu_custom_call.1} parent=1 // pred_region
      _
    $region21: #{tpu_custom_call.1} parent=1 // pred_fallthru
      _
    // Predicated region
    $region22: #{tpu_custom_call.1} parent=1 // pred_check
      _
    $region23: #{tpu_custom_call.1} parent=1 // pred_check_branch
      %25 = sbr.rel (0) target = $region25
    $region24: #{tpu_custom_call.1} parent=1 // pred_region
      _
    $region25: #{tpu_custom_call.1} parent=1 // pred_fallthru
      _
    // Predicated region
    $region26: #{tpu_custom_call.1} parent=1 // pred_check
      _
    $region27: #{tpu_custom_call.1} parent=1 // pred_check_branch
      %27 = sbr.rel (0) target = $region29
    $region28: #{tpu_custom_call.1} parent=1 // pred_region
      _
    $region29: #{tpu_custom_call.1} parent=1 // pred_fallthru
      _
    // Predicated region
    $region30: #{tpu_custom_call.1} parent=1 // pred_check
      _
    $region31: #{tpu_custom_call.1} parent=1 // pred_check_branch
      %29 = sbr.rel (0) target = $region33
    $region32: #{tpu_custom_call.1} parent=1 // pred_region
      _
    $region33: #{tpu_custom_call.1} parent=1 // pred_fallthru
      _
    %v31 = vld [vmem:[%s0] sm:$0xff]
    %v32 = vld [vmem:[%s0 + $0x8] sm:$0xff]
    %v33 = vld [vmem:[%s0 + $0x10] sm:$0xff]
    %v34 = vld [vmem:[%s0 + $0x18] sm:$0xff]
    %v35 = vld [vmem:[%s0 + $0x20] sm:$0xff]
    %v36 = vld [vmem:[%s0 + $0x28] sm:$0xff]
    %v37 = vld [vmem:[%s0 + $0x30] sm:$0xff]
    %v38 = vld [vmem:[%s0 + $0x38] sm:$0xff]
    %v39 = vpack.c.bf16 %v33, %v31
    %v40 = vpack.c.bf16 %v34, %v32
    %v41 = vpack.c.bf16 %v37, %v35
    %v42 = vpack.c.bf16 %v38, %v36
    %v43 = vld [vmem:[%s1] sm:$0xf]
    %v44 = vld [vmem:[%s1 + $0x4] sm:$0xf]
    %v45 = vld [vmem:[%s1 + $0x8] sm:$0xf]
    %v46 = vld [vmem:[%s1 + $0xc] sm:$0xf]
    %v47 = vld [vmem:[%s1 + $0x10] sm:$0xf]
    %v48 = vld [vmem:[%s1 + $0x14] sm:$0xf]
    %v49 = vld [vmem:[%s1 + $0x18] sm:$0xf]
    %v50 = vld [vmem:[%s1 + $0x1c] sm:$0xf]
    %v59 = vunpack.c.l.b16 %v43
    %v60 = vunpack.c.l.b16 %v44
    %v61 = vunpack.c.l.b16 %v45
    %v62 = vunpack.c.l.b16 %v46
    %v63 = vunpack.c.l.b16 %v47
    %v64 = vunpack.c.l.b16 %v48
    %v65 = vunpack.c.l.b16 %v49
    %v66 = vunpack.c.l.b16 %v50
    %v67 = vpack.c.b16 %v60, %v59
    %v68 = vpack.c.b16 %v62, %v61
    %v69 = vpack.c.b16 %v64, %v63
    %v70 = vpack.c.b16 %v66, %v65
    %vm71 = vcmask 261120
    %v73 = vsel %vm71, %v67, 0
    %v76 = vsel %vm71, %v68, 0
    %v79 = vsel %vm71, %v69, 0
    %v82 = vsel %vm71, %v70, 0
    %84 = vmatprep.subr.bf16.mxu0 %v40
    %85 = vmatpush1.bf16.msra.mxu0 %v39
    %86 = vmatprep.subr.bf16.mxu0 %v42
    %87 = vmatpush1.bf16.msra.mxu0 %v41
    %88 = vmatprep.subr.bf16.mxu0 0
    %89 = vmatpush1.bf16.msra.mxu0 0
    %90 = vmatprep.subr.bf16.mxu0 0
    %91 = vmatpush1.bf16.msra.mxu0 0
    %92 = vmatprep.subr.bf16.mxu0 0
    %93 = vmatpush1.bf16.msra.mxu0 0
    %94 = vmatprep.subr.bf16.mxu0 0
    %95 = vmatpush1.bf16.msra.mxu0 0
    %96 = vmatprep.subr.bf16.mxu0 0
    %97 = vmatpush1.bf16.msra.mxu0 0
    %98 = vmatprep.subr.bf16.mxu0 0
    %99 = vmatpush1.bf16.msra.mxu0 0
    %100 = vmatprep.subr.bf16.mxu0 0
    %101 = vmatpush1.bf16.msra.mxu0 0
    %102 = vmatprep.subr.bf16.mxu0 0
    %103 = vmatpush1.bf16.msra.mxu0 0
    %104 = vmatprep.subr.bf16.mxu0 0
    %105 = vmatpush1.bf16.msra.mxu0 0
    %106 = vmatprep.subr.bf16.mxu0 0
    %107 = vmatpush1.bf16.msra.mxu0 0
    %108 = vmatprep.subr.bf16.mxu0 0
    %109 = vmatpush1.bf16.msra.mxu0 0
    %110 = vmatprep.subr.bf16.mxu0 0
    %111 = vmatpush1.bf16.msra.mxu0 0
    %112 = vmatprep.subr.bf16.mxu0 0
    %113 = vmatpush1.bf16.msra.mxu0 0
    %114 = vmatprep.subr.bf16.mxu0 0
    %115 = vmatpush1.bf16.msra.mxu0 0
    %116 = vmatprep.mubr.bf16.mxu0 0
    %117 = vmatmul.mubr.bf16.gmra.mrb[0].mxu0 %v73
    %v118 = vpop.f32.mrb[0].mxu0
    %v119 = vadd.f32 0.0, %v118
    %v120 = vpop.f32.mrb[0].mxu0
    %v121 = vadd.f32 0.0, %v120
    %v122 = vpop.f32.mrb[0].mxu0
    %v123 = vadd.f32 0.0, %v122
    %v124 = vpop.f32.mrb[0].mxu0
    %v125 = vadd.f32 0.0, %v124
    %126 = vmatprep.mubr.bf16.mxu0 0
    %127 = vmatmul.mubr.bf16.gmra.mrb[0].mxu0 %v76
    %v128 = vpop.f32.mrb[0].mxu0
    %v129 = vadd.f32 0.0, %v128
    %v130 = vpop.f32.mrb[0].mxu0
    %v131 = vadd.f32 0.0, %v130
    %v132 = vpop.f32.mrb[0].mxu0
    %v133 = vadd.f32 0.0, %v132
    %v134 = vpop.f32.mrb[0].mxu0
    %v135 = vadd.f32 0.0, %v134
    %136 = vmatprep.mubr.bf16.mxu0 0
    %137 = vmatmul.mubr.bf16.gmra.mrb[0].mxu0 %v79
    %v138 = vpop.f32.mrb[0].mxu0
    %v139 = vadd.f32 0.0, %v138
    %v140 = vpop.f32.mrb[0].mxu0
    %v141 = vadd.f32 0.0, %v140
    %v142 = vpop.f32.mrb[0].mxu0
    %v143 = vadd.f32 0.0, %v142
    %v144 = vpop.f32.mrb[0].mxu0
    %v145 = vadd.f32 0.0, %v144
    %146 = vmatprep.mubr.bf16.mxu0 0
    %147 = vmatmul.mubr.bf16.gmra.mrb[0].mxu0 %v82
    %v148 = vpop.f32.mrb[0].mxu0
    %v149 = vadd.f32 0.0, %v148
    %v150 = vpop.f32.mrb[0].mxu0
    %v151 = vadd.f32 0.0, %v150
    %v152 = vpop.f32.mrb[0].mxu0
    %v153 = vadd.f32 0.0, %v152
    %v154 = vpop.f32.mrb[0].mxu0
    %v155 = vadd.f32 0.0, %v154
    %156 = vdwg.mxu0
    %v157 = vld [vmem:[%s2] sm:$0xff]
    %v158 = vld [vmem:[%s2 + $0x8] sm:$0xff]
    %v159 = vld [vmem:[%s2 + $0x10] sm:$0xff]
    %v160 = vld [vmem:[%s2 + $0x18] sm:$0xff]
    %v161 = vld [vmem:[%s2 + $0x20] sm:$0xff]
    %v162 = vld [vmem:[%s2 + $0x28] sm:$0xff]
    %v163 = vld [vmem:[%s2 + $0x30] sm:$0xff]
    %v164 = vld [vmem:[%s2 + $0x38] sm:$0xff]
    %v165 = vld [vmem:[%s3] sm:$0xff]
    %v166 = vld [vmem:[%s3 + $0x8] sm:$0xff]
    %v167 = vld [vmem:[%s3 + $0x10] sm:$0xff]
    %v168 = vld [vmem:[%s3 + $0x18] sm:$0xff]
    %v169 = vld [vmem:[%s3 + $0x20] sm:$0xff]
    %v170 = vld [vmem:[%s3 + $0x28] sm:$0xff]
    %v171 = vld [vmem:[%s3 + $0x30] sm:$0xff]
    %v172 = vld [vmem:[%s3 + $0x38] sm:$0xff]
    %v173 = vadd.f32 %v119, %v121
    %174 = vadd.xlane.f32.xlu0 %v173
    %v175 = vpop.xlane.xlu0 %174
    %v176 = vadd.f32 %v123, %v125
    %177 = vadd.xlane.f32.xlu0 %v176
    %v178 = vpop.xlane.xlu0 %177
    %v179 = vadd.f32 %v129, %v131
    %180 = vadd.xlane.f32.xlu0 %v179
    %v181 = vpop.xlane.xlu0 %180
    %v182 = vadd.f32 %v133, %v135
    %183 = vadd.xlane.f32.xlu0 %v182
    %v184 = vpop.xlane.xlu0 %183
    %v185 = vadd.f32 %v139, %v141
    %186 = vadd.xlane.f32.xlu0 %v185
    %v187 = vpop.xlane.xlu0 %186
    %v188 = vadd.f32 %v143, %v145
    %189 = vadd.xlane.f32.xlu0 %v188
    %v190 = vpop.xlane.xlu0 %189
    %v191 = vadd.f32 %v149, %v151
    %192 = vadd.xlane.f32.xlu0 %v191
    %v193 = vpop.xlane.xlu0 %192
    %v194 = vadd.f32 %v153, %v155
    %195 = vadd.xlane.f32.xlu0 %v194
    %v196 = vpop.xlane.xlu0 %195
    %v197 = vmul.f32 %v175, 0.00390625
    %v198 = vmul.f32 %v178, 0.00390625
    %v199 = vmul.f32 %v181, 0.00390625
    %v200 = vmul.f32 %v184, 0.00390625
    %v201 = vmul.f32 %v187, 0.00390625
    %v202 = vmul.f32 %v190, 0.00390625
    %v203 = vmul.f32 %v193, 0.00390625
    %v204 = vmul.f32 %v196, 0.00390625
    %v205 = vmul.f32 %v119, %v119
    %v206 = vmul.f32 %v121, %v121
    %v207 = vmul.f32 %v123, %v123
    %v208 = vmul.f32 %v125, %v125
    %v209 = vmul.f32 %v129, %v129
    %v210 = vmul.f32 %v131, %v131
    %v211 = vmul.f32 %v133, %v133
    %v212 = vmul.f32 %v135, %v135
    %v213 = vmul.f32 %v139, %v139
    %v214 = vmul.f32 %v141, %v141
    %v215 = vmul.f32 %v143, %v143
    %v216 = vmul.f32 %v145, %v145
    %v217 = vmul.f32 %v149, %v149
    %v218 = vmul.f32 %v151, %v151
    %v219 = vmul.f32 %v153, %v153
    %v220 = vmul.f32 %v155, %v155
    %v221 = vadd.f32 %v205, %v206
    %222 = vadd.xlane.f32.xlu0 %v221
    %v223 = vpop.xlane.xlu0 %222
    %v224 = vadd.f32 %v207, %v208
    %225 = vadd.xlane.f32.xlu0 %v224
    %v226 = vpop.xlane.xlu0 %225
    %v227 = vadd.f32 %v209, %v210
    %228 = vadd.xlane.f32.xlu0 %v227
    %v229 = vpop.xlane.xlu0 %228
    %v230 = vadd.f32 %v211, %v212
    %231 = vadd.xlane.f32.xlu0 %v230
    %v232 = vpop.xlane.xlu0 %231
    %v233 = vadd.f32 %v213, %v214
    %234 = vadd.xlane.f32.xlu0 %v233
    %v235 = vpop.xlane.xlu0 %234
    %v236 = vadd.f32 %v215, %v216
    %237 = vadd.xlane.f32.xlu0 %v236
    %v238 = vpop.xlane.xlu0 %237
    %v239 = vadd.f32 %v217, %v218
    %240 = vadd.xlane.f32.xlu0 %v239
    %v241 = vpop.xlane.xlu0 %240
    %v242 = vadd.f32 %v219, %v220
    %243 = vadd.xlane.f32.xlu0 %v242
    %v244 = vpop.xlane.xlu0 %243
    %v245 = vmul.f32 %v223, 0.00390625
    %v246 = vmul.f32 %v226, 0.00390625
    %v247 = vmul.f32 %v229, 0.00390625
    %v248 = vmul.f32 %v232, 0.00390625
    %v249 = vmul.f32 %v235, 0.00390625
    %v250 = vmul.f32 %v238, 0.00390625
    %v251 = vmul.f32 %v241, 0.00390625
    %v252 = vmul.f32 %v244, 0.00390625
    %v253 = vmul.f32 %v197, %v197
    %v254 = vmul.f32 %v198, %v198
    %v255 = vmul.f32 %v199, %v199
    %v256 = vmul.f32 %v200, %v200
    %v257 = vmul.f32 %v201, %v201
    %v258 = vmul.f32 %v202, %v202
    %v259 = vmul.f32 %v203, %v203
    %v260 = vmul.f32 %v204, %v204
    %v261 = vsub.f32 %v245, %v253
    %v262 = vsub.f32 %v246, %v254
    %v263 = vsub.f32 %v247, %v255
    %v264 = vsub.f32 %v248, %v256
    %v265 = vsub.f32 %v249, %v257
    %v266 = vsub.f32 %v250, %v258
    %v267 = vsub.f32 %v251, %v259
    %v268 = vsub.f32 %v252, %v260
    %v269 = vmax.f32 %v261, 0.0
    %v270 = vmax.f32 %v262, 0.0
    %v271 = vmax.f32 %v263, 0.0
    %v272 = vmax.f32 %v264, 0.0
    %v273 = vmax.f32 %v265, 0.0
    %v274 = vmax.f32 %v266, 0.0
    %v275 = vmax.f32 %v267, 0.0
    %v276 = vmax.f32 %v268, 0.0
    %v277 = vadd.f32 %v269, 1e-05
    %v278 = vadd.f32 %v270, 1e-05
    %v279 = vadd.f32 %v271, 1e-05
    %v280 = vadd.f32 %v272, 1e-05
    %v281 = vadd.f32 %v273, 1e-05
    %v282 = vadd.f32 %v274, 1e-05
    %v283 = vadd.f32 %v275, 1e-05
    %v284 = vadd.f32 %v276, 1e-05
    %v285 = vrsqrt.pop %v277
    %v286 = vrsqrt.pop %v278
    %v287 = vrsqrt.pop %v279
    %v288 = vrsqrt.pop %v280
    %v289 = vrsqrt.pop %v281
    %v290 = vrsqrt.pop %v282
    %v291 = vrsqrt.pop %v283
    %v292 = vrsqrt.pop %v284
    %v293 = vmul.f32 %v157, %v285
    %v294 = vmul.f32 %v158, %v286
    %v295 = vmul.f32 %v159, %v287
    %v296 = vmul.f32 %v160, %v288
    %v297 = vmul.f32 %v161, %v289
    %v298 = vmul.f32 %v162, %v290
    %v299 = vmul.f32 %v163, %v291
    %v300 = vmul.f32 %v164, %v292
    %v301 = vmul.f32 %v197, %v293
    %v302 = vmul.f32 %v198, %v294
    %v303 = vmul.f32 %v199, %v295
    %v304 = vmul.f32 %v200, %v296
    %v305 = vmul.f32 %v201, %v297
    %v306 = vmul.f32 %v202, %v298
    %v307 = vmul.f32 %v203, %v299
    %v308 = vmul.f32 %v204, %v300
    %v309 = vsub.f32 %v165, %v301
    %v310 = vsub.f32 %v166, %v302
    %v311 = vsub.f32 %v167, %v303
    %v312 = vsub.f32 %v168, %v304
    %v313 = vsub.f32 %v169, %v305
    %v314 = vsub.f32 %v170, %v306
    %v315 = vsub.f32 %v171, %v307
    %v316 = vsub.f32 %v172, %v308
    %318 = vset.pattern.permute.xlu0 0
    %319 = vperm.xlu0 %318, %v293
    %v320 = vpop.permute.xlu0 %319
    %323 = vset.pattern.permute.xlu0 0
    %324 = vperm.xlu0 %323, %v294
    %v325 = vpop.permute.xlu0 %324
    %328 = vset.pattern.permute.xlu0 0
    %329 = vperm.xlu0 %328, %v295
    %v330 = vpop.permute.xlu0 %329
    %333 = vset.pattern.permute.xlu0 0
    %334 = vperm.xlu0 %333, %v296
    %v335 = vpop.permute.xlu0 %334
    %338 = vset.pattern.permute.xlu0 0
    %339 = vperm.xlu0 %338, %v297
    %v340 = vpop.permute.xlu0 %339
    %343 = vset.pattern.permute.xlu0 0
    %344 = vperm.xlu0 %343, %v298
    %v345 = vpop.permute.xlu0 %344
    %348 = vset.pattern.permute.xlu0 0
    %349 = vperm.xlu0 %348, %v299
    %v350 = vpop.permute.xlu0 %349
    %353 = vset.pattern.permute.xlu0 0
    %354 = vperm.xlu0 %353, %v300
    %v355 = vpop.permute.xlu0 %354
    %v357 = vmul.f32 %v119, %v320
    %v358 = vmul.f32 %v121, %v320
    %v359 = vmul.f32 %v123, %v325
    %v360 = vmul.f32 %v125, %v325
    %v361 = vmul.f32 %v129, %v330
    %v362 = vmul.f32 %v131, %v330
    %v363 = vmul.f32 %v133, %v335
    %v364 = vmul.f32 %v135, %v335
    %v365 = vmul.f32 %v139, %v340
    %v366 = vmul.f32 %v141, %v340
    %v367 = vmul.f32 %v143, %v345
    %v368 = vmul.f32 %v145, %v345
    %v369 = vmul.f32 %v149, %v350
    %v370 = vmul.f32 %v151, %v350
    %v371 = vmul.f32 %v153, %v355
    %v372 = vmul.f32 %v155, %v355
    %374 = vset.pattern.permute.xlu0 0
    %375 = vperm.xlu0 %374, %v309
    %v376 = vpop.permute.xlu0 %375
    %379 = vset.pattern.permute.xlu0 0
    %380 = vperm.xlu0 %379, %v310
    %v381 = vpop.permute.xlu0 %380
    %384 = vset.pattern.permute.xlu0 0
    %385 = vperm.xlu0 %384, %v311
    %v386 = vpop.permute.xlu0 %385
    %389 = vset.pattern.permute.xlu0 0
    %390 = vperm.xlu0 %389, %v312
    %v391 = vpop.permute.xlu0 %390
    %394 = vset.pattern.permute.xlu0 0
    %395 = vperm.xlu0 %394, %v313
    %v396 = vpop.permute.xlu0 %395
    %399 = vset.pattern.permute.xlu0 0
    %400 = vperm.xlu0 %399, %v314
    %v401 = vpop.permute.xlu0 %400
    %404 = vset.pattern.permute.xlu0 0
    %405 = vperm.xlu0 %404, %v315
    %v406 = vpop.permute.xlu0 %405
    %409 = vset.pattern.permute.xlu0 0
    %410 = vperm.xlu0 %409, %v316
    %v411 = vpop.permute.xlu0 %410
    %v413 = vadd.f32 %v357, %v376
    %v414 = vadd.f32 %v358, %v376
    %v415 = vadd.f32 %v359, %v381
    %v416 = vadd.f32 %v360, %v381
    %v417 = vadd.f32 %v361, %v386
    %v418 = vadd.f32 %v362, %v386
    %v419 = vadd.f32 %v363, %v391
    %v420 = vadd.f32 %v364, %v391
    %v421 = vadd.f32 %v365, %v396
    %v422 = vadd.f32 %v366, %v396
    %v423 = vadd.f32 %v367, %v401
    %v424 = vadd.f32 %v368, %v401
    %v425 = vadd.f32 %v369, %v406
    %v426 = vadd.f32 %v370, %v406
    %v427 = vadd.f32 %v371, %v411
    %v428 = vadd.f32 %v372, %v411
    %v429 = vmax.f32 %v413, 0.0
    %v430 = vmax.f32 %v414, 0.0
    %v431 = vmax.f32 %v415, 0.0
    %v432 = vmax.f32 %v416, 0.0
    %v433 = vmax.f32 %v417, 0.0
    %v434 = vmax.f32 %v418, 0.0
    %v435 = vmax.f32 %v419, 0.0
    %v436 = vmax.f32 %v420, 0.0
    %v437 = vmax.f32 %v421, 0.0
    %v438 = vmax.f32 %v422, 0.0
    %v439 = vmax.f32 %v423, 0.0
    %v440 = vmax.f32 %v424, 0.0
    %v441 = vmax.f32 %v425, 0.0
    %v442 = vmax.f32 %v426, 0.0
    %v443 = vmax.f32 %v427, 0.0
    %v444 = vmax.f32 %v428, 0.0
    %v445 = vpack.c.bf16 %v431, %v429
    %v446 = vpack.c.bf16 %v432, %v430
    %v447 = vpack.c.bf16 %v435, %v433
    %v448 = vpack.c.bf16 %v436, %v434
    %v449 = vpack.c.bf16 %v439, %v437
    %v450 = vpack.c.bf16 %v440, %v438
    %v451 = vpack.c.bf16 %v443, %v441
    %v452 = vpack.c.bf16 %v444, %v442
    %v453 = vld [vmem:[%s4] sm:$0xf]
    %v454 = vld [vmem:[%s4 + $0x4] sm:$0xf]
    %v455 = vld [vmem:[%s4 + $0x8] sm:$0xf]
    %v456 = vld [vmem:[%s4 + $0xc] sm:$0xf]
    %v457 = vld [vmem:[%s4 + $0x10] sm:$0xf]
    %v458 = vld [vmem:[%s4 + $0x14] sm:$0xf]
    %v459 = vld [vmem:[%s4 + $0x18] sm:$0xf]
    %v460 = vld [vmem:[%s4 + $0x1c] sm:$0xf]
    %v469 = vunpack.c.l.b16 %v453
    %v470 = vunpack.c.l.b16 %v454
    %v471 = vunpack.c.l.b16 %v455
    %v472 = vunpack.c.l.b16 %v456
    %v473 = vunpack.c.l.b16 %v457
    %v474 = vunpack.c.l.b16 %v458
    %v475 = vunpack.c.l.b16 %v459
    %v476 = vunpack.c.l.b16 %v460
    %v477 = vpack.c.b16 %v470, %v469
    %v478 = vpack.c.b16 %v472, %v471
    %v479 = vpack.c.b16 %v474, %v473
    %v480 = vpack.c.b16 %v476, %v475
    %vm481 = vcmask 523264
    %v483 = vsel %vm481, %v477, 0
    %v486 = vsel %vm481, %v478, 0
    %v489 = vsel %vm481, %v479, 0
    %v492 = vsel %vm481, %v480, 0
    %494 = vmatprep.subr.bf16.mxu0 %v446
    %495 = vmatpush1.bf16.msra.mxu0 %v445
    %496 = vmatprep.subr.bf16.mxu0 %v448
    %497 = vmatpush1.bf16.msra.mxu0 %v447
    %498 = vmatprep.subr.bf16.mxu0 %v450
    %499 = vmatpush1.bf16.msra.mxu0 %v449
    %500 = vmatprep.subr.bf16.mxu0 %v452
    %501 = vmatpush1.bf16.msra.mxu0 %v451
    %502 = vmatprep.subr.bf16.mxu0 0
    %503 = vmatpush1.bf16.msra.mxu0 0
    %504 = vmatprep.subr.bf16.mxu0 0
    %505 = vmatpush1.bf16.msra.mxu0 0
    %506 = vmatprep.subr.bf16.mxu0 0
    %507 = vmatpush1.bf16.msra.mxu0 0
    %508 = vmatprep.subr.bf16.mxu0 0
    %509 = vmatpush1.bf16.msra.mxu0 0
    %510 = vmatprep.subr.bf16.mxu0 0
    %511 = vmatpush1.bf16.msra.mxu0 0
    %512 = vmatprep.subr.bf16.mxu0 0
    %513 = vmatpush1.bf16.msra.mxu0 0
    %514 = vmatprep.subr.bf16.mxu0 0
    %515 = vmatpush1.bf16.msra.mxu0 0
    %516 = vmatprep.subr.bf16.mxu0 0
    %517 = vmatpush1.bf16.msra.mxu0 0
    %518 = vmatprep.subr.bf16.mxu0 0
    %519 = vmatpush1.bf16.msra.mxu0 0
    %520 = vmatprep.subr.bf16.mxu0 0
    %521 = vmatpush1.bf16.msra.mxu0 0
    %522 = vmatprep.subr.bf16.mxu0 0
    %523 = vmatpush1.bf16.msra.mxu0 0
    %524 = vmatprep.subr.bf16.mxu0 0
    %525 = vmatpush1.bf16.msra.mxu0 0
    %526 = vmatprep.mubr.bf16.mxu0 0
    %527 = vmatmul.mubr.bf16.gmra.mrb[0].mxu0 %v483
    %v528 = vpop.f32.mrb[0].mxu0
    %v529 = vadd.f32 0.0, %v528
    %v530 = vpop.f32.mrb[0].mxu0
    %v531 = vadd.f32 0.0, %v530
    %v532 = vpop.f32.mrb[0].mxu0
    %v533 = vadd.f32 0.0, %v532
    %v534 = vpop.f32.mrb[0].mxu0
    %v535 = vadd.f32 0.0, %v534
    %536 = vmatprep.mubr.bf16.mxu0 0
    %537 = vmatmul.mubr.bf16.gmra.mrb[0].mxu0 %v486
    %v538 = vpop.f32.mrb[0].mxu0
    %v539 = vadd.f32 0.0, %v538
    %v540 = vpop.f32.mrb[0].mxu0
    %v541 = vadd.f32 0.0, %v540
    %v542 = vpop.f32.mrb[0].mxu0
    %v543 = vadd.f32 0.0, %v542
    %v544 = vpop.f32.mrb[0].mxu0
    %v545 = vadd.f32 0.0, %v544
    %546 = vmatprep.mubr.bf16.mxu0 0
    %547 = vmatmul.mubr.bf16.gmra.mrb[0].mxu0 %v489
    %v548 = vpop.f32.mrb[0].mxu0
    %v549 = vadd.f32 0.0, %v548
    %v550 = vpop.f32.mrb[0].mxu0
    %v551 = vadd.f32 0.0, %v550
    %v552 = vpop.f32.mrb[0].mxu0
    %v553 = vadd.f32 0.0, %v552
    %v554 = vpop.f32.mrb[0].mxu0
    %v555 = vadd.f32 0.0, %v554
    %556 = vmatprep.mubr.bf16.mxu0 0
    %557 = vmatmul.mubr.bf16.gmra.mrb[0].mxu0 %v492
    %v558 = vpop.f32.mrb[0].mxu0
    %v559 = vadd.f32 0.0, %v558
    %v560 = vpop.f32.mrb[0].mxu0
    %v561 = vadd.f32 0.0, %v560
    %v562 = vpop.f32.mrb[0].mxu0
    %v563 = vadd.f32 0.0, %v562
    %v564 = vpop.f32.mrb[0].mxu0
    %v565 = vadd.f32 0.0, %v564
    %566 = vdwg.mxu0
    %v567 = vld [vmem:[%s5] sm:$0xff]
    %v568 = vld [vmem:[%s5 + $0x8] sm:$0xff]
    %v569 = vld [vmem:[%s5 + $0x10] sm:$0xff]
    %v570 = vld [vmem:[%s5 + $0x18] sm:$0xff]
    %v571 = vld [vmem:[%s5 + $0x20] sm:$0xff]
    %v572 = vld [vmem:[%s5 + $0x28] sm:$0xff]
    %v573 = vld [vmem:[%s5 + $0x30] sm:$0xff]
    %v574 = vld [vmem:[%s5 + $0x38] sm:$0xff]
    %v575 = vld [vmem:[%s6] sm:$0xff]
    %v576 = vld [vmem:[%s6 + $0x8] sm:$0xff]
    %v577 = vld [vmem:[%s6 + $0x10] sm:$0xff]
    %v578 = vld [vmem:[%s6 + $0x18] sm:$0xff]
    %v579 = vld [vmem:[%s6 + $0x20] sm:$0xff]
    %v580 = vld [vmem:[%s6 + $0x28] sm:$0xff]
    %v581 = vld [vmem:[%s6 + $0x30] sm:$0xff]
    %v582 = vld [vmem:[%s6 + $0x38] sm:$0xff]
    %v583 = vadd.f32 %v529, %v531
    %584 = vadd.xlane.f32.xlu0 %v583
    %v585 = vpop.xlane.xlu0 %584
    %v586 = vadd.f32 %v533, %v535
    %587 = vadd.xlane.f32.xlu0 %v586
    %v588 = vpop.xlane.xlu0 %587
    %v589 = vadd.f32 %v539, %v541
    %590 = vadd.xlane.f32.xlu0 %v589
    %v591 = vpop.xlane.xlu0 %590
    %v592 = vadd.f32 %v543, %v545
    %593 = vadd.xlane.f32.xlu0 %v592
    %v594 = vpop.xlane.xlu0 %593
    %v595 = vadd.f32 %v549, %v551
    %596 = vadd.xlane.f32.xlu0 %v595
    %v597 = vpop.xlane.xlu0 %596
    %v598 = vadd.f32 %v553, %v555
    %599 = vadd.xlane.f32.xlu0 %v598
    %v600 = vpop.xlane.xlu0 %599
    %v601 = vadd.f32 %v559, %v561
    %602 = vadd.xlane.f32.xlu0 %v601
    %v603 = vpop.xlane.xlu0 %602
    %v604 = vadd.f32 %v563, %v565
    %605 = vadd.xlane.f32.xlu0 %v604
    %v606 = vpop.xlane.xlu0 %605
    %v607 = vmul.f32 %v585, 0.00390625
    %v608 = vmul.f32 %v588, 0.00390625
    %v609 = vmul.f32 %v591, 0.00390625
    %v610 = vmul.f32 %v594, 0.00390625
    %v611 = vmul.f32 %v597, 0.00390625
    %v612 = vmul.f32 %v600, 0.00390625
    %v613 = vmul.f32 %v603, 0.00390625
    %v614 = vmul.f32 %v606, 0.00390625
    %v615 = vmul.f32 %v529, %v529
    %v616 = vmul.f32 %v531, %v531
    %v617 = vmul.f32 %v533, %v533
    %v618 = vmul.f32 %v535, %v535
    %v619 = vmul.f32 %v539, %v539
    %v620 = vmul.f32 %v541, %v541
    %v621 = vmul.f32 %v543, %v543
    %v622 = vmul.f32 %v545, %v545
    %v623 = vmul.f32 %v549, %v549
    %v624 = vmul.f32 %v551, %v551
    %v625 = vmul.f32 %v553, %v553
    %v626 = vmul.f32 %v555, %v555
    %v627 = vmul.f32 %v559, %v559
    %v628 = vmul.f32 %v561, %v561
    %v629 = vmul.f32 %v563, %v563
    %v630 = vmul.f32 %v565, %v565
    %v631 = vadd.f32 %v615, %v616
    %632 = vadd.xlane.f32.xlu0 %v631
    %v633 = vpop.xlane.xlu0 %632
    %v634 = vadd.f32 %v617, %v618
    %635 = vadd.xlane.f32.xlu0 %v634
    %v636 = vpop.xlane.xlu0 %635
    %v637 = vadd.f32 %v619, %v620
    %638 = vadd.xlane.f32.xlu0 %v637
    %v639 = vpop.xlane.xlu0 %638
    %v640 = vadd.f32 %v621, %v622
    %641 = vadd.xlane.f32.xlu0 %v640
    %v642 = vpop.xlane.xlu0 %641
    %v643 = vadd.f32 %v623, %v624
    %644 = vadd.xlane.f32.xlu0 %v643
    %v645 = vpop.xlane.xlu0 %644
    %v646 = vadd.f32 %v625, %v626
    %647 = vadd.xlane.f32.xlu0 %v646
    %v648 = vpop.xlane.xlu0 %647
    %v649 = vadd.f32 %v627, %v628
    %650 = vadd.xlane.f32.xlu0 %v649
    %v651 = vpop.xlane.xlu0 %650
    %v652 = vadd.f32 %v629, %v630
    %653 = vadd.xlane.f32.xlu0 %v652
    %v654 = vpop.xlane.xlu0 %653
    %v655 = vmul.f32 %v633, 0.00390625
    %v656 = vmul.f32 %v636, 0.00390625
    %v657 = vmul.f32 %v639, 0.00390625
    %v658 = vmul.f32 %v642, 0.00390625
    %v659 = vmul.f32 %v645, 0.00390625
    %v660 = vmul.f32 %v648, 0.00390625
    %v661 = vmul.f32 %v651, 0.00390625
    %v662 = vmul.f32 %v654, 0.00390625
    %v663 = vmul.f32 %v607, %v607
    %v664 = vmul.f32 %v608, %v608
    %v665 = vmul.f32 %v609, %v609
    %v666 = vmul.f32 %v610, %v610
    %v667 = vmul.f32 %v611, %v611
    %v668 = vmul.f32 %v612, %v612
    %v669 = vmul.f32 %v613, %v613
    %v670 = vmul.f32 %v614, %v614
    %v671 = vsub.f32 %v655, %v663
    %v672 = vsub.f32 %v656, %v664
    %v673 = vsub.f32 %v657, %v665
    %v674 = vsub.f32 %v658, %v666
    %v675 = vsub.f32 %v659, %v667
    %v676 = vsub.f32 %v660, %v668
    %v677 = vsub.f32 %v661, %v669
    %v678 = vsub.f32 %v662, %v670
    %v679 = vmax.f32 %v671, 0.0
    %v680 = vmax.f32 %v672, 0.0
    %v681 = vmax.f32 %v673, 0.0
    %v682 = vmax.f32 %v674, 0.0
    %v683 = vmax.f32 %v675, 0.0
    %v684 = vmax.f32 %v676, 0.0
    %v685 = vmax.f32 %v677, 0.0
    %v686 = vmax.f32 %v678, 0.0
    %v687 = vadd.f32 %v679, 1e-05
    %v688 = vadd.f32 %v680, 1e-05
    %v689 = vadd.f32 %v681, 1e-05
    %v690 = vadd.f32 %v682, 1e-05
    %v691 = vadd.f32 %v683, 1e-05
    %v692 = vadd.f32 %v684, 1e-05
    %v693 = vadd.f32 %v685, 1e-05
    %v694 = vadd.f32 %v686, 1e-05
    %v695 = vrsqrt.pop %v687
    %v696 = vrsqrt.pop %v688
    %v697 = vrsqrt.pop %v689
    %v698 = vrsqrt.pop %v690
    %v699 = vrsqrt.pop %v691
    %v700 = vrsqrt.pop %v692
    %v701 = vrsqrt.pop %v693
    %v702 = vrsqrt.pop %v694
    %v703 = vmul.f32 %v567, %v695
    %v704 = vmul.f32 %v568, %v696
    %v705 = vmul.f32 %v569, %v697
    %v706 = vmul.f32 %v570, %v698
    %v707 = vmul.f32 %v571, %v699
    %v708 = vmul.f32 %v572, %v700
    %v709 = vmul.f32 %v573, %v701
    %v710 = vmul.f32 %v574, %v702
    %v711 = vmul.f32 %v607, %v703
    %v712 = vmul.f32 %v608, %v704
    %v713 = vmul.f32 %v609, %v705
    %v714 = vmul.f32 %v610, %v706
    %v715 = vmul.f32 %v611, %v707
    %v716 = vmul.f32 %v612, %v708
    %v717 = vmul.f32 %v613, %v709
    %v718 = vmul.f32 %v614, %v710
    %v719 = vsub.f32 %v575, %v711
    %v720 = vsub.f32 %v576, %v712
    %v721 = vsub.f32 %v577, %v713
    %v722 = vsub.f32 %v578, %v714
    %v723 = vsub.f32 %v579, %v715
    %v724 = vsub.f32 %v580, %v716
    %v725 = vsub.f32 %v581, %v717
    %v726 = vsub.f32 %v582, %v718
    %728 = vset.pattern.permute.xlu0 0
    %729 = vperm.xlu0 %728, %v703
    %v730 = vpop.permute.xlu0 %729
    %733 = vset.pattern.permute.xlu0 0
    %734 = vperm.xlu0 %733, %v704
    %v735 = vpop.permute.xlu0 %734
    %738 = vset.pattern.permute.xlu0 0
    %739 = vperm.xlu0 %738, %v705
    %v740 = vpop.permute.xlu0 %739
    %743 = vset.pattern.permute.xlu0 0
    %744 = vperm.xlu0 %743, %v706
    %v745 = vpop.permute.xlu0 %744
    %748 = vset.pattern.permute.xlu0 0
    %749 = vperm.xlu0 %748, %v707
    %v750 = vpop.permute.xlu0 %749
    %753 = vset.pattern.permute.xlu0 0
    %754 = vperm.xlu0 %753, %v708
    %v755 = vpop.permute.xlu0 %754
    %758 = vset.pattern.permute.xlu0 0
    %759 = vperm.xlu0 %758, %v709
    %v760 = vpop.permute.xlu0 %759
    %763 = vset.pattern.permute.xlu0 0
    %764 = vperm.xlu0 %763, %v710
    %v765 = vpop.permute.xlu0 %764
    %v767 = vmul.f32 %v529, %v730
    %v768 = vmul.f32 %v531, %v730
    %v769 = vmul.f32 %v533, %v735
    %v770 = vmul.f32 %v535, %v735
    %v771 = vmul.f32 %v539, %v740
    %v772 = vmul.f32 %v541, %v740
    %v773 = vmul.f32 %v543, %v745
    %v774 = vmul.f32 %v545, %v745
    %v775 = vmul.f32 %v549, %v750
    %v776 = vmul.f32 %v551, %v750
    %v777 = vmul.f32 %v553, %v755
    %v778 = vmul.f32 %v555, %v755
    %v779 = vmul.f32 %v559, %v760
    %v780 = vmul.f32 %v561, %v760
    %v781 = vmul.f32 %v563, %v765
    %v782 = vmul.f32 %v565, %v765
    %784 = vset.pattern.permute.xlu0 0
    %785 = vperm.xlu0 %784, %v719
    %v786 = vpop.permute.xlu0 %785
    %789 = vset.pattern.permute.xlu0 0
    %790 = vperm.xlu0 %789, %v720
    %v791 = vpop.permute.xlu0 %790
    %794 = vset.pattern.permute.xlu0 0
    %795 = vperm.xlu0 %794, %v721
    %v796 = vpop.permute.xlu0 %795
    %799 = vset.pattern.permute.xlu0 0
    %800 = vperm.xlu0 %799, %v722
    %v801 = vpop.permute.xlu0 %800
    %804 = vset.pattern.permute.xlu0 0
    %805 = vperm.xlu0 %804, %v723
    %v806 = vpop.permute.xlu0 %805
    %809 = vset.pattern.permute.xlu0 0
    %810 = vperm.xlu0 %809, %v724
    %v811 = vpop.permute.xlu0 %810
    %814 = vset.pattern.permute.xlu0 0
    %815 = vperm.xlu0 %814, %v725
    %v816 = vpop.permute.xlu0 %815
    %819 = vset.pattern.permute.xlu0 0
    %820 = vperm.xlu0 %819, %v726
    %v821 = vpop.permute.xlu0 %820
    %v823 = vadd.f32 %v767, %v786
    %v824 = vadd.f32 %v768, %v786
    %v825 = vadd.f32 %v769, %v791
    %v826 = vadd.f32 %v770, %v791
    %v827 = vadd.f32 %v771, %v796
    %v828 = vadd.f32 %v772, %v796
    %v829 = vadd.f32 %v773, %v801
    %v830 = vadd.f32 %v774, %v801
    %v831 = vadd.f32 %v775, %v806
    %v832 = vadd.f32 %v776, %v806
    %v833 = vadd.f32 %v777, %v811
    %v834 = vadd.f32 %v778, %v811
    %v835 = vadd.f32 %v779, %v816
    %v836 = vadd.f32 %v780, %v816
    %v837 = vadd.f32 %v781, %v821
    %v838 = vadd.f32 %v782, %v821
    %v839 = vmax.f32 %v823, 0.0
    %v840 = vmax.f32 %v824, 0.0
    %v841 = vmax.f32 %v825, 0.0
    %v842 = vmax.f32 %v826, 0.0
    %v843 = vmax.f32 %v827, 0.0
    %v844 = vmax.f32 %v828, 0.0
    %v845 = vmax.f32 %v829, 0.0
    %v846 = vmax.f32 %v830, 0.0
    %v847 = vmax.f32 %v831, 0.0
    %v848 = vmax.f32 %v832, 0.0
    %v849 = vmax.f32 %v833, 0.0
    %v850 = vmax.f32 %v834, 0.0
    %v851 = vmax.f32 %v835, 0.0
    %v852 = vmax.f32 %v836, 0.0
    %v853 = vmax.f32 %v837, 0.0
    %v854 = vmax.f32 %v838, 0.0
    %v855 = vpack.c.bf16 %v841, %v839
    %v856 = vpack.c.bf16 %v842, %v840
    %v857 = vpack.c.bf16 %v845, %v843
    %v858 = vpack.c.bf16 %v846, %v844
    %v859 = vpack.c.bf16 %v849, %v847
    %v860 = vpack.c.bf16 %v850, %v848
    %v861 = vpack.c.bf16 %v853, %v851
    %v862 = vpack.c.bf16 %v854, %v852
    %v863 = vld [vmem:[%s7] sm:$0xf]
    %v864 = vld [vmem:[%s7 + $0x4] sm:$0xf]
    %v865 = vld [vmem:[%s7 + $0x8] sm:$0xf]
    %v866 = vld [vmem:[%s7 + $0xc] sm:$0xf]
    %v871 = vunpack.c.l.b16 %v863
    %v872 = vunpack.c.l.b16 %v864
    %v873 = vunpack.c.l.b16 %v865
    %v874 = vunpack.c.l.b16 %v866
    %v875 = vpack.c.b16 %v872, %v871
    %v876 = vpack.c.b16 %v874, %v873
    %v878 = vsel %vm481, %v875, 0
    %v881 = vsel %vm481, %v876, 0
    %883 = vmatprep.subr.bf16.mxu0 %v856
    %884 = vmatpush1.bf16.msra.mxu0 %v855
    %885 = vmatprep.subr.bf16.mxu0 %v858
    %886 = vmatpush1.bf16.msra.mxu0 %v857
    %887 = vmatprep.subr.bf16.mxu0 %v860
    %888 = vmatpush1.bf16.msra.mxu0 %v859
    %889 = vmatprep.subr.bf16.mxu0 %v862
    %890 = vmatpush1.bf16.msra.mxu0 %v861
    %891 = vmatprep.subr.bf16.mxu0 0
    %892 = vmatpush1.bf16.msra.mxu0 0
    %893 = vmatprep.subr.bf16.mxu0 0
    %894 = vmatpush1.bf16.msra.mxu0 0
    %895 = vmatprep.subr.bf16.mxu0 0
    %896 = vmatpush1.bf16.msra.mxu0 0
    %897 = vmatprep.subr.bf16.mxu0 0
    %898 = vmatpush1.bf16.msra.mxu0 0
    %899 = vmatprep.subr.bf16.mxu0 0
    %900 = vmatpush1.bf16.msra.mxu0 0
    %901 = vmatprep.subr.bf16.mxu0 0
    %902 = vmatpush1.bf16.msra.mxu0 0
    %903 = vmatprep.subr.bf16.mxu0 0
    %904 = vmatpush1.bf16.msra.mxu0 0
    %905 = vmatprep.subr.bf16.mxu0 0
    %906 = vmatpush1.bf16.msra.mxu0 0
    %907 = vmatprep.subr.bf16.mxu0 0
    %908 = vmatpush1.bf16.msra.mxu0 0
    %909 = vmatprep.subr.bf16.mxu0 0
    %910 = vmatpush1.bf16.msra.mxu0 0
    %911 = vmatprep.subr.bf16.mxu0 0
    %912 = vmatpush1.bf16.msra.mxu0 0
    %913 = vmatprep.subr.bf16.mxu0 0
    %914 = vmatpush1.bf16.msra.mxu0 0
    %915 = vmatprep.mubr.bf16.mxu0 0
    %916 = vmatmul.mubr.bf16.gmra.mrb[0].mxu0 %v878
    %v917 = vpop.f32.mrb[0].mxu0
    %v918 = vadd.f32 0.0, %v917
    %v919 = vpop.f32.mrb[0].mxu0
    %v920 = vadd.f32 0.0, %v919
    %v921 = vpop.f32.mrb[0].mxu0
    %v922 = vadd.f32 0.0, %v921
    %v923 = vpop.f32.mrb[0].mxu0
    %v924 = vadd.f32 0.0, %v923
    %925 = vmatprep.mubr.bf16.mxu0 0
    %926 = vmatmul.mubr.bf16.gmra.mrb[0].mxu0 %v881
    %v927 = vpop.f32.mrb[0].mxu0
    %v928 = vadd.f32 0.0, %v927
    %v929 = vpop.f32.mrb[0].mxu0
    %v930 = vadd.f32 0.0, %v929
    %v931 = vpop.f32.mrb[0].mxu0
    %v932 = vadd.f32 0.0, %v931
    %v933 = vpop.f32.mrb[0].mxu0
    %v934 = vadd.f32 0.0, %v933
    %935 = vdwg.mxu0
    %936 = vst [vmem:[#allocation2] sm:$0xff] %v918
    %937 = vst [vmem:[#allocation2 + $0x8] sm:$0xff] %v922
    %938 = vst [vmem:[#allocation2 + $0x10] sm:$0xff] %v928
    %939 = vst [vmem:[#allocation2 + $0x18] sm:$0xff] %v932
    %s940 = scalar_lea.vmem [#allocation2], 32
    %941 = vst [vmem:[%s940] sm:$0xff] %v920
    %942 = vst [vmem:[%s940 + $0x8] sm:$0xff] %v924
    %943 = vst [vmem:[%s940 + $0x10] sm:$0xff] %v930
    %944 = vst [vmem:[%s940 + $0x18] sm:$0xff] %v934
    // Predicated region
    $region34: #{tpu_custom_call.1} parent=1 // pred_check
      _
    $region35: #{tpu_custom_call.1} parent=1 // pred_check_branch
      %946 = sbr.rel (0) target = $region37
    $region36: #{tpu_custom_call.1} parent=1 // pred_region
      %s948 = ssub.s32 1024, 1024
      %949 = vsyncadd [#allocation3], %s948
      %s950 = sshll.u32 [#allocation2], 4
      %s951 = int_to_ptr.vmem [resolvable:$true] %s950
      %956 = dma.vmem_to_hbm [thread:$0]  %s951, 1024, %s8, [#allocation3], 128, 128, 8
    $region37: #{tpu_custom_call.1} parent=1 // pred_fallthru
      _
    // Predicated region
    $region38: #{tpu_custom_call.1} parent=1 // pred_check
      _
    $region39: #{tpu_custom_call.1} parent=1 // pred_check_branch
      %958 = sbr.rel (0) target = $region41
    $region40: #{tpu_custom_call.1} parent=1 // pred_region
      %959 = dma.done [#allocation3], 1024
    $region41: #{tpu_custom_call.1} parent=1 // pred_fallthru
      _
    %960 = vsyncpa [#allocation3], 1

</llo_original>
